<compile_context>
chip_gen: v6e
topology: v6e:2x2x1
jax: 0.10.0
libtpu: 0.0.40
codegen_flags: <defaults>
</compile_context>

<pallas_src>
import math

import jax
import jax.numpy as jnp
from jax.experimental import pallas as pl
from jax.experimental.pallas import tpu as pltpu


def _grouped_im2col_matmul_kernel(w_ref, x_ref, o_ref):
    # w_ref: (1, Cout_g, Ktot)    weights of one group, k-order = (ci, kd, kh, kw)
    # x_ref: (1, 1, Ktot, TM)     im2col columns of one (batch, group, m-tile)
    # o_ref: (1, 1, Cout_g, TM)   lane-dense output tile
    o_ref[0, 0] = jnp.dot(
        w_ref[0], x_ref[0, 0], preferred_element_type=jnp.float32
    ).astype(o_ref.dtype)


def _pick_m_tile(M):
    # Largest lane-dense tile that evenly divides M; fall back to the full
    # extent (still a legal block: equals the array dim).
    for tm in (2048, 1024, 512, 256, 128):
        if M % tm == 0:
            return tm
    return M


def conv3d_dilated_pallas(x, weight, *, stride=1, dilation=1, groups=1,
                          compute_dtype=None):
    """Dilated grouped 3-D convolution, no bias (PyTorch CDilated semantics).

    x: (N, Cin, D, H, W), weight: (Cout, Cin//groups, kD, kH, kW).
    padding = ((k-1)//2) * dilation per spatial dim (as in CDilated).
    """
    N, Cin, D, H, W = x.shape
    Cout, Cin_g, kD, kH, kW = weight.shape
    assert Cin == Cin_g * groups and Cout % groups == 0
    Cout_g = Cout // groups
    s, d = stride, dilation
    out_dtype = x.dtype

    pd, ph, pw = ((kD - 1) // 2) * d, ((kH - 1) // 2) * d, ((kW - 1) // 2) * d
    Dp, Hp, Wp = D + 2 * pd, H + 2 * ph, W + 2 * pw
    Do = (Dp - d * (kD - 1) - 1) // s + 1
    Ho = (Hp - d * (kH - 1) - 1) // s + 1
    Wo = (Wp - d * (kW - 1) - 1) // s + 1
    assert Do > 0 and Ho > 0 and Wo > 0
    KK = kD * kH * kW
    Ktot = Cin_g * KK
    M = Do * Ho * Wo

    if compute_dtype is not None:              # e.g. bf16 fast path on v6e/v7x
        x = x.astype(compute_dtype)
        weight = weight.astype(compute_dtype)

    # Zero-pad spatial dims once.
    x_pad = jnp.pad(x, ((0, 0), (0, 0), (pd, pd), (ph, ph), (pw, pw)))

    # im2col in the wrapper: one strided slice per dilated tap, stacked so the
    # (Cin, KK) flatten and the group split are pure reshapes (no transpose).
    # TODO(synk): for very large activations, gather the taps inside the kernel
    # pipeline (halo index_map) instead of materializing the KK-x im2col here.
    cols = []
    for kd in range(kD):
        d0 = kd * d
        for kh in range(kH):
            h0 = kh * d
            for kw in range(kW):
                w0 = kw * d
                cols.append(
                    x_pad[:, :,
                          d0:d0 + (Do - 1) * s + 1:s,
                          h0:h0 + (Ho - 1) * s + 1:s,
                          w0:w0 + (Wo - 1) * s + 1:s])
    x_col = jnp.stack(cols, axis=2)            # (N, Cin, KK, Do, Ho, Wo)
    x_col = x_col.reshape(N, groups, Ktot, M)  # Cin is group-major: pure reshape

    # (Cout, Cin_g, kD, kH, kW) -> (G, Cout_g, Ktot); same k-ordering as x_col.
    w_mat = weight.reshape(groups, Cout_g, Ktot)

    TM = _pick_m_tile(M)
    # TODO(synk): if Ktot * TM ever outgrows VMEM (huge Cin), add a K grid axis
    # ("arbitrary") with a VMEM f32 accumulator.

    out = pl.pallas_call(
        _grouped_im2col_matmul_kernel,
        out_shape=jax.ShapeDtypeStruct((N, groups, Cout_g, M), out_dtype),
        grid_spec=pltpu.PrefetchScalarGridSpec(
            num_scalar_prefetch=0,
            grid=(groups, N, M // TM),   # groups slowest -> weight DMA'd once/group
            in_specs=[
                pl.BlockSpec((1, Cout_g, Ktot), lambda g, n, m: (g, 0, 0)),
                pl.BlockSpec((1, 1, Ktot, TM), lambda g, n, m: (n, g, 0, m)),
            ],
            out_specs=pl.BlockSpec((1, 1, Cout_g, TM),
                                   lambda g, n, m: (n, g, 0, m)),
        ),
        compiler_params=pltpu.CompilerParams(
            dimension_semantics=("parallel", "parallel", "parallel")),
    )(w_mat, x_col)

    # (N, G, Cout_g, M) -> NCDHW.  PyTorch grouped-conv output channels are
    # group-major, so this is a pure reshape (no transpose).
    return out.reshape(N, Cout, Do, Ho, Wo)


class CDilated:
    """JAX/Pallas equivalent of the PyTorch CDilated module (Conv3d, no bias)."""

    def __init__(self, nIn, nOut, kSize, stride=1, d=1, groups=1, *,
                 key, compute_dtype=None):
        self.stride = stride
        self.d = d
        self.groups = groups
        self.compute_dtype = compute_dtype
        fan_in = (nIn // groups) * kSize * kSize * kSize
        bound = 1.0 / math.sqrt(fan_in)   # PyTorch default conv init range
        self.weight = jax.random.uniform(
            key, (nOut, nIn // groups, kSize, kSize, kSize),
            minval=-bound, maxval=bound, dtype=jnp.float32)

    def __call__(self, x):
        return conv3d_dilated_pallas(
            x, self.weight, stride=self.stride, dilation=self.d,
            groups=self.groups, compute_dtype=self.compute_dtype)


def _reference(x, weight, *, stride=1, dilation=1, groups=1):
    k = weight.shape[2:]
    pads = [(((kk - 1) // 2) * dilation,) * 2 for kk in k]
    return jax.lax.conv_general_dilated(
        x, weight, window_strides=(stride,) * 3, padding=pads,
        rhs_dilation=(dilation,) * 3,
        dimension_numbers=("NCDHW", "OIDHW", "NCDHW"),
        feature_group_count=groups,
        precision=jax.lax.Precision.HIGHEST)


if __name__ == "__main__":
    key = jax.random.PRNGKey(0)
    kx, kw1, kw2, kw3 = jax.random.split(key, 4)

    x = jax.random.normal(kx, (2, 4, 8, 8, 8), dtype=jnp.float32)

    # 1) defaults: groups=1, d=1, stride=1
    mod1 = CDilated(nIn=4, nOut=8, kSize=3, stride=1, d=1, groups=1, key=kw1)
    out1 = mod1(x)
    jax.block_until_ready(out1)
    ref1 = _reference(x, mod1.weight, stride=1, dilation=1, groups=1)
    assert out1.shape == ref1.shape == (2, 8, 8, 8, 8)
    assert jnp.allclose(out1, ref1, atol=5e-2, rtol=5e-2)

    # 2) grouped conv
    mod2 = CDilated(nIn=4, nOut=8, kSize=3, stride=1, d=1, groups=2, key=kw2)
    out2 = mod2(x)
    jax.block_until_ready(out2)
    ref2 = _reference(x, mod2.weight, stride=1, dilation=1, groups=2)
    assert out2.shape == ref2.shape == (2, 8, 8, 8, 8)
    assert jnp.allclose(out2, ref2, atol=5e-2, rtol=5e-2)

    # 3) dilation (the defining feature of CDilated)
    mod3 = CDilated(nIn=4, nOut=8, kSize=3, stride=1, d=2, groups=1, key=kw3)
    out3 = mod3(x)
    jax.block_until_ready(out3)
    ref3 = _reference(x, mod3.weight, stride=1, dilation=2, groups=1)
    assert out3.shape == ref3.shape == (2, 8, 8, 8, 8)
    assert jnp.allclose(out3, ref3, atol=5e-2, rtol=5e-2)

    # 4) stride=2
    out4 = conv3d_dilated_pallas(x, mod1.weight, stride=2, dilation=1, groups=1)
    jax.block_until_ready(out4)
    ref4 = _reference(x, mod1.weight, stride=2, dilation=1, groups=1)
    assert out4.shape == ref4.shape == (2, 8, 4, 4, 4)
    assert jnp.allclose(out4, ref4, atol=5e-2, rtol=5e-2)

    # 5) bf16 compute path (v6e/v7x fast path), f32 accumulation + f32 output
    mod5 = CDilated(nIn=4, nOut=8, kSize=3, stride=1, d=1, groups=1, key=kw1,
                    compute_dtype=jnp.bfloat16)
    out5 = mod5(x)
    jax.block_until_ready(out5)
    assert out5.dtype == jnp.float32
    assert jnp.allclose(out5, ref1, atol=5e-2, rtol=5e-2)

    print("KERNEL_OK")
</pallas_src>

<mosaic_0001>
module attributes {stable_mosaic.version = 11 : i64} {
  func.func @_grouped_im2col_matmul_kernel(%arg0: i32, %arg1: i32, %arg2: i32, %arg3: memref<1x8x108xf32, #tpu.memory_space<vmem>>, %arg4: memref<1x1x108x512xf32, #tpu.memory_space<vmem>>, %arg5: memref<1x1x8x512xf32, #tpu.memory_space<vmem>>) attributes {dimension_semantics = [#tpu.dimension_semantics<parallel>, #tpu.dimension_semantics<parallel>, #tpu.dimension_semantics<parallel>], iteration_bounds = array<i64: 1, 2, 1>, scalar_prefetch = 0 : i64, scratch_operands = 0 : i64, tpu.core_type = #tpu.core_type<tc>, window_params = [{transform_indices = @transform_0, window_bounds = array<i64: 1, 8, 108>}, {transform_indices = @transform_1, window_bounds = array<i64: 1, 1, 108, 512>}, {transform_indices = @transform_2, window_bounds = array<i64: 1, 1, 8, 512>}]} {
    %c0 = arith.constant 0 : index
    %c0_0 = arith.constant 0 : index
    %c0_1 = arith.constant 0 : index
    %0 = vector.load %arg3[%c0, %c0_0, %c0_1] : memref<1x8x108xf32, #tpu.memory_space<vmem>>, vector<1x8x108xf32>
    %1 = vector.shape_cast %0 : vector<1x8x108xf32> to vector<8x108xf32>
    %c0_2 = arith.constant 0 : index
    %c0_3 = arith.constant 0 : index
    %c0_4 = arith.constant 0 : index
    %c0_5 = arith.constant 0 : index
    %2 = vector.load %arg4[%c0_2, %c0_3, %c0_4, %c0_5] : memref<1x1x108x512xf32, #tpu.memory_space<vmem>>, vector<1x1x108x512xf32>
    %3 = vector.shape_cast %2 : vector<1x1x108x512xf32> to vector<108x512xf32>
    %cst = arith.constant dense<0.000000e+00> : vector<8x512xf32>
    %4 = tpu.matmul %1, %3, %cst {dimension_numbers = #tpu.dot_dimension_numbers<[1], [0], [0], [1], [0, 0, 1, 1], [], []>} : vector<8x108xf32>, vector<108x512xf32>, vector<8x512xf32> -> vector<8x512xf32>
    %c0_6 = arith.constant 0 : index
    %c0_7 = arith.constant 0 : index
    %c0_8 = arith.constant 0 : index
    %c0_9 = arith.constant 0 : index
    %5 = vector.load %arg5[%c0_6, %c0_7, %c0_8, %c0_9] : memref<1x1x8x512xf32, #tpu.memory_space<vmem>>, vector<1x1x8x512xf32>
    %6 = vector.shape_cast %5 : vector<1x1x8x512xf32> to vector<8x512xf32>
    %7 = vector.shape_cast %4 : vector<8x512xf32> to vector<1x1x8x512xf32>
    tpu.vector_store %arg5[%c0_6, %c0_7, %c0_8, %c0_9], %7 {strides = array<i32>} : memref<1x1x8x512xf32, #tpu.memory_space<vmem>>, vector<1x1x8x512xf32>,
    return
  }
  func.func @transform_0(%arg0: i32, %arg1: i32, %arg2: i32) -> (i32, i32, i32) {
    %c0_i32 = arith.constant 0 : i32
    %c0_i32_0 = arith.constant 0 : i32
    %c0_i32_1 = arith.constant 0 : i32
    return %arg0, %c0_i32, %c0_i32_0 : i32, i32, i32
  }
  func.func @transform_1(%arg0: i32, %arg1: i32, %arg2: i32) -> (i32, i32, i32, i32) {
    %c0_i32 = arith.constant 0 : i32
    %c0_i32_0 = arith.constant 0 : i32
    return %arg1, %arg0, %c0_i32, %arg2 : i32, i32, i32, i32
  }
  func.func @transform_2(%arg0: i32, %arg1: i32, %arg2: i32) -> (i32, i32, i32, i32) {
    %c0_i32 = arith.constant 0 : i32
    %c0_i32_0 = arith.constant 0 : i32
    return %arg1, %arg0, %c0_i32, %arg2 : i32, i32, i32, i32
  }
}

</mosaic_0001>

<llo_original>
// kernel: tpu_custom_call.1
$region0: #{tpu_custom_call.1}
  #allocation0 [shape = 'u32[]', space=smem, size = 0x4, offset = 0x4, fixed_abs, tag = 'smem constant byte address 0x4 - core index']
  #allocation1 [shape = 'u32[144,128]{1,0:T(1,128)}', space=vmem, size = 0x12000, scoped, tag = 'internal scratch']
  %s0 = inlined_call_operand.vmem [shape: f32[1,8,108], index: 0, kind: input, shape index: {}]
  %s1 = inlined_call_operand.vmem [shape: f32[2,1,108,512], index: 1, kind: input, shape index: {}]
  %s2 = inlined_call_operand.hbm [shape: f32[2,1,8,512], index: 2, kind: output, shape index: {}]
  %s3 = sld [smem:[#allocation0]]
  $region41: #{tpu_custom_call.1} parent=0
    _
  %s5 = ssub.s32 1, %s3
  %s6 = scalar_select 0, %s5, %s3
  $region1: #{tpu_custom_call.1} parent=0
    #allocation2 [shape = 'u8[32768]{0}', space=vmem, size = 0x8000, scoped, tag = 'output window, operand 0']
    #allocation3 [shape = 's32[2]{0}', space=sflag, size = 0x8, scoped, tag = 'scoped memory for tpu_custom_call.1']
    %7 = vsyncpa [#allocation3], 0
    %s8 = scalar_lea.sflag [#allocation3], 1
    %9 = vsyncpa %s8, 0
    loop: start=0, step=1, limit=4
    $region2: #{tpu_custom_call.1} parent=1 // loop_pre_header
      _
    $region3: #{tpu_custom_call.1} parent=1 // loop_header
      %s11 = sphi 0, %s15
      %p12 = scmp.ge.s32.totalorder %s11, 4
      %s18 = sphi 0, %s37
      %s19 = sphi 0, %s33
      %s20 = sphi 0, %s29
      %s21 = sphi 0, %s18
      %s22 = sphi 0, %s19
      %s23 = sphi 0, %s20
      %s24 = sphi 0, %s21
      %s25 = sphi 0, %s22
      %s26 = sphi 0, %s23
      %s40 = sphi 0, %s42
      %s43 = sphi 0, %s40
      %s44 = sphi 0, %s43
      %s60 = sphi 0, %s44
      %s70 = sphi 0, %s72
      %s73 = sphi 0, %s70
      %s74 = sphi 0, %s73
      %s90 = sphi 0, %s74
      %s100 = sphi 0, %s102
      %s103 = sphi 0, %s100
      %s104 = sphi 0, %s103
      %s120 = sphi 0, %s104
    $region4: #{tpu_custom_call.1} parent=1 // loop_header_branch
      %14 = sbr.rel (%p12) target = $region8
    $region5: #{tpu_custom_call.1} parent=1 // loop_body
      %s16 = ssub.s32 %s11, 1
      %s17 = ssub.s32 %s11, 2
      %s27 = sadd.s32 1, %s20
      %p28 = scmp.ge.s32.totalorder %s27, 1
      %s29 = scalar_select %p28, 0, %s27
      %s30 = sadd.s32 1, %s19
      %s31 = scalar_select %p28, %s30, %s19
      %p32 = scmp.ge.s32.totalorder %s31, 2
      %s33 = scalar_select %p32, 0, %s31
      %s34 = sadd.s32 1, %s18
      %s35 = scalar_select %p32, %s34, %s18
      %p36 = scmp.ge.s32.totalorder %s35, 1
      %s37 = scalar_select %p36, 0, %s35
      %s38 = ssub.s32 %s18, %s37
      %p39 = scmp.eq.s32.totalorder %s38, 0
      %s41 = sadd.s32 %s40, 1
      %s42 = scalar_select %p39, %s40, %s41
      %p45 = pneg %p39
      %p46 = scmp.eq.s32.totalorder %s11, 1
      %p47 = por %p45, %p46
      %p48 = scmp.ne.s32.totalorder %s40, %s43
      %p49 = scmp.eq.s32.totalorder %s11, 0
      %p50 = por %p48, %p49
      %p51 = scmp.ne.s32.totalorder %s40, %s43
      %p52 = scmp.eq.s32.totalorder %s16, 1
      %p53 = por %p51, %p52
      %p54 = scmp.ne.s32.totalorder %s43, %s44
      %p55 = scmp.eq.s32.totalorder %s16, 0
      %p56 = por %p54, %p55
      %p57 = scmp.ne.s32.totalorder %s43, %s44
      %p58 = scmp.eq.s32.totalorder %s17, 1
      %p59 = por %p57, %p58
      %p61 = scmp.ne.s32.totalorder %s44, %s60
      %p62 = scmp.eq.s32.totalorder %s17, 0
      %p63 = por %p61, %p62
      %s64 = ssub.s32 %s19, %s33
      %s65 = ssub.s32 %s18, %s37
      %s66 = sor.u32 %s64, %s65
      %s67 = ssub.s32 %s20, %s29
      %s68 = sor.u32 %s66, %s67
      %p69 = scmp.eq.s32.totalorder %s68, 0
      %s71 = sadd.s32 %s70, 1
      %s72 = scalar_select %p69, %s70, %s71
      %p75 = pneg %p69
      %p76 = scmp.eq.s32.totalorder %s11, 1
      %p77 = por %p75, %p76
      %p78 = scmp.ne.s32.totalorder %s70, %s73
      %p79 = scmp.eq.s32.totalorder %s11, 0
      %p80 = por %p78, %p79
      %p81 = scmp.ne.s32.totalorder %s70, %s73
      %p82 = scmp.eq.s32.totalorder %s16, 1
      %p83 = por %p81, %p82
      %p84 = scmp.ne.s32.totalorder %s73, %s74
      %p85 = scmp.eq.s32.totalorder %s16, 0
      %p86 = por %p84, %p85
      %p87 = scmp.ne.s32.totalorder %s73, %s74
      %p88 = scmp.eq.s32.totalorder %s17, 1
      %p89 = por %p87, %p88
      %p91 = scmp.ne.s32.totalorder %s74, %s90
      %p92 = scmp.eq.s32.totalorder %s17, 0
      %p93 = por %p91, %p92
      %s94 = ssub.s32 %s19, %s33
      %s95 = ssub.s32 %s18, %s37
      %s96 = sor.u32 %s94, %s95
      %s97 = ssub.s32 %s20, %s29
      %s98 = sor.u32 %s96, %s97
      %p99 = scmp.eq.s32.totalorder %s98, 0
      %s101 = sadd.s32 %s100, 1
      %s102 = scalar_select %p99, %s100, %s101
      %p105 = pneg %p99
      %p106 = scmp.eq.s32.totalorder %s11, 1
      %p107 = por %p105, %p106
      %p108 = scmp.ne.s32.totalorder %s100, %s103
      %p109 = scmp.eq.s32.totalorder %s11, 0
      %p110 = por %p108, %p109
      %p111 = scmp.ne.s32.totalorder %s100, %s103
      %p112 = scmp.eq.s32.totalorder %s16, 1
      %p113 = por %p111, %p112
      %p114 = scmp.ne.s32.totalorder %s103, %s104
      %p115 = scmp.eq.s32.totalorder %s16, 0
      %p116 = por %p114, %p115
      %p117 = scmp.ne.s32.totalorder %s103, %s104
      %p118 = scmp.eq.s32.totalorder %s17, 1
      %p119 = por %p117, %p118
      %p121 = scmp.ne.s32.totalorder %s104, %s120
      %p122 = scmp.eq.s32.totalorder %s17, 0
      %p123 = por %p121, %p122
      %p124 = scmp.le.s32.totalorder 1, %s11
      %p125 = scmp.lt.s32.totalorder %s11, 3
      %p126 = pnand %p124, %p125
      %p127 = pneg %p126
      // Predicated region
      $region9: #{tpu_custom_call.1} parent=5 // pred_check
        _
      $region10: #{tpu_custom_call.1} parent=5 // pred_check_branch
        %129 = sbr.rel (%p126) target = $region12
      $region11: #{tpu_custom_call.1} parent=5 // pred_region
        %s130 = ssub.s32 %s11, 1
        // Predicated region
        $region13: #{tpu_custom_call.1} parent=11 // pred_check
          %p131 = pneg %p56
        $region14: #{tpu_custom_call.1} parent=11 // pred_check_branch
          %133 = sbr.rel (%p131) target = $region16
        $region15: #{tpu_custom_call.1} parent=11 // pred_region
          %p134 = scmp.lt.s32.totalorder %s21, 0
          %s135 = scalar_select %p134, %s21, 0
          %s136 = smul.addr %s135, 8
          %s137 = scalar_lea.vmem %s0, %s136
        $region16: #{tpu_custom_call.1} parent=11 // pred_fallthru
          _
      $region12: #{tpu_custom_call.1} parent=5 // pred_fallthru
        _
      %p138 = scmp.lt.s32.totalorder %s11, 2
      // Predicated region
      $region17: #{tpu_custom_call.1} parent=5 // pred_check
        %p139 = pneg %p138
      $region18: #{tpu_custom_call.1} parent=5 // pred_check_branch
        %141 = sbr.rel (%p139) target = $region20
      $region19: #{tpu_custom_call.1} parent=5 // pred_region
        // Predicated region
        $region21: #{tpu_custom_call.1} parent=19 // pred_check
          %p142 = pneg %p80
        $region22: #{tpu_custom_call.1} parent=19 // pred_check_branch
          %144 = sbr.rel (%p142) target = $region24
        $region23: #{tpu_custom_call.1} parent=19 // pred_region
          %s145 = smul.u32 4, %s20
          %p146 = scmp.lt.s32.totalorder %s19, 1
          %s147 = scalar_select %p146, %s19, 1
          %p148 = scmp.lt.s32.totalorder %s18, 0
          %s149 = scalar_select %p148, %s18, 0
          %p150 = scmp.lt.s32.totalorder %s145, 3
          %s151 = scalar_select %p150, %s145, 3
          %s152 = smul.addr %s149, 56
          %s153 = sadd.s32 %s151, %s152
          %s154 = smul.addr %s147, 56
          %s155 = sadd.s32 %s153, %s154
          %s156 = smul.addr %s155, 8
          %s157 = scalar_lea.vmem %s1, %s156
          %s158 = smul.u32 4, %s20
        $region24: #{tpu_custom_call.1} parent=19 // pred_fallthru
          _
      $region20: #{tpu_custom_call.1} parent=5 // pred_fallthru
        _
      %p159 = scmp.le.s32.totalorder 1, %s11
      %p160 = scmp.lt.s32.totalorder %s11, 3
      %p161 = pnand %p159, %p160
      %p162 = pneg %p161
      // Predicated region
      $region25: #{tpu_custom_call.1} parent=5 // pred_check
        _
      $region26: #{tpu_custom_call.1} parent=5 // pred_check_branch
        %164 = sbr.rel (%p161) target = $region28
      $region27: #{tpu_custom_call.1} parent=5 // pred_region
        %s165 = ssub.s32 %s11, 1
        %p166 = scmp.lt.s32.totalorder %s21, 0
        %s167 = scalar_select %p166, %s21, 0
        %s168 = smul.addr %s167, 8
        %s169 = scalar_lea.vmem %s0, %s168
        %p170 = pneg %p56
        %p171 = pneg %p53
        %s172 = smul.u32 4, %s23
        %p173 = scmp.lt.s32.totalorder %s22, 1
        %s174 = scalar_select %p173, %s22, 1
        %p175 = scmp.lt.s32.totalorder %s21, 0
        %s176 = scalar_select %p175, %s21, 0
        %p177 = scmp.lt.s32.totalorder %s172, 3
        %s178 = scalar_select %p177, %s172, 3
        %s179 = smul.addr %s176, 56
        %s180 = sadd.s32 %s178, %s179
        %s181 = smul.addr %s174, 56
        %s182 = sadd.s32 %s180, %s181
        %s183 = smul.addr %s182, 8
        %s184 = scalar_lea.vmem %s1, %s183
        %p185 = pneg %p86
        %p186 = pneg %p83
        %p187 = pneg %p116
        %p188 = pneg %p113
        %s189 = sand.u32 %s103, 1
        %s190 = scalar_lea.sflag [#allocation3], %s189
        %s191 = sand.u32 %s103, 1
        %s192 = smul.addr %s191, 32
        %s193 = scalar_lea.vmem [#allocation2], %s192
        %p194 = scmp.lt.s32.totalorder %s21, 0
        %s195 = scalar_select %p194, %s21, 0
        %s196 = smul.addr %s195, 8
        %s197 = scalar_lea.vmem %s0, %s196
        %s198 = smul.u32 4, %s23
        %p199 = scmp.lt.s32.totalorder %s22, 1
        %s200 = scalar_select %p199, %s22, 1
        %p201 = scmp.lt.s32.totalorder %s21, 0
        %s202 = scalar_select %p201, %s21, 0
        %p203 = scmp.lt.s32.totalorder %s198, 3
        %s204 = scalar_select %p203, %s198, 3
        %s205 = smul.addr %s202, 56
        %s206 = sadd.s32 %s204, %s205
        %s207 = smul.addr %s200, 56
        %s208 = sadd.s32 %s206, %s207
        %s209 = smul.addr %s208, 8
        %s210 = scalar_lea.vmem %s1, %s209
        %s211 = smul.u32 4, %s23
        %s212 = smul.u32 4, %s23
        %v213 = vld [vmem:[%s197] sm:$0xff]
        %v214 = vld [vmem:[%s210] sm:$0xff]
        %v215 = vld [vmem:[%s210 + $0x8] sm:$0xff]
        %v216 = vld [vmem:[%s210 + $0x10] sm:$0xff]
        %v217 = vld [vmem:[%s210 + $0x18] sm:$0xff]
        %v218 = vld [vmem:[%s210 + $0x20] sm:$0xff]
        %v219 = vld [vmem:[%s210 + $0x28] sm:$0xff]
        %v220 = vld [vmem:[%s210 + $0x30] sm:$0xff]
        %v221 = vld [vmem:[%s210 + $0x38] sm:$0xff]
        %v222 = vld [vmem:[%s210 + $0x40] sm:$0xff]
        %v223 = vld [vmem:[%s210 + $0x48] sm:$0xff]
        %v224 = vld [vmem:[%s210 + $0x50] sm:$0xff]
        %v225 = vld [vmem:[%s210 + $0x58] sm:$0xff]
        %v226 = vld [vmem:[%s210 + $0x60] sm:$0xff]
        %v227 = vld [vmem:[%s210 + $0x68] sm:$0xff]
        %v228 = vld [vmem:[%s210 + $0x70] sm:$0xff]
        %v229 = vld [vmem:[%s210 + $0x78] sm:$0xff]
        %v230 = vld [vmem:[%s210 + $0x80] sm:$0xff]
        %v231 = vld [vmem:[%s210 + $0x88] sm:$0xff]
        %v232 = vld [vmem:[%s210 + $0x90] sm:$0xff]
        %v233 = vld [vmem:[%s210 + $0x98] sm:$0xff]
        %v234 = vld [vmem:[%s210 + $0xa0] sm:$0xff]
        %v235 = vld [vmem:[%s210 + $0xa8] sm:$0xff]
        %v236 = vld [vmem:[%s210 + $0xb0] sm:$0xff]
        %v237 = vld [vmem:[%s210 + $0xb8] sm:$0xff]
        %v238 = vld [vmem:[%s210 + $0xc0] sm:$0xff]
        %v239 = vld [vmem:[%s210 + $0xc8] sm:$0xff]
        %v240 = vld [vmem:[%s210 + $0xd0] sm:$0xff]
        %v241 = vld [vmem:[%s210 + $0xd8] sm:$0xff]
        %v242 = vld [vmem:[%s210 + $0xe0] sm:$0xff]
        %v243 = vld [vmem:[%s210 + $0xe8] sm:$0xff]
        %v244 = vld [vmem:[%s210 + $0xf0] sm:$0xff]
        %v245 = vld [vmem:[%s210 + $0xf8] sm:$0xff]
        %v246 = vld [vmem:[%s210 + $0x100] sm:$0xff]
        %v247 = vld [vmem:[%s210 + $0x108] sm:$0xff]
        %v248 = vld [vmem:[%s210 + $0x110] sm:$0xff]
        %v249 = vld [vmem:[%s210 + $0x118] sm:$0xff]
        %v250 = vld [vmem:[%s210 + $0x120] sm:$0xff]
        %v251 = vld [vmem:[%s210 + $0x128] sm:$0xff]
        %v252 = vld [vmem:[%s210 + $0x130] sm:$0xff]
        %v253 = vld [vmem:[%s210 + $0x138] sm:$0xff]
        %v254 = vld [vmem:[%s210 + $0x140] sm:$0xff]
        %v255 = vld [vmem:[%s210 + $0x148] sm:$0xff]
        %v256 = vld [vmem:[%s210 + $0x150] sm:$0xff]
        %v257 = vld [vmem:[%s210 + $0x158] sm:$0xff]
        %v258 = vld [vmem:[%s210 + $0x160] sm:$0xff]
        %v259 = vld [vmem:[%s210 + $0x168] sm:$0xff]
        %v260 = vld [vmem:[%s210 + $0x170] sm:$0xff]
        %v261 = vld [vmem:[%s210 + $0x178] sm:$0xff]
        %v262 = vld [vmem:[%s210 + $0x180] sm:$0xff]
        %v263 = vld [vmem:[%s210 + $0x188] sm:$0xff]
        %v264 = vld [vmem:[%s210 + $0x190] sm:$0xff]
        %v265 = vld [vmem:[%s210 + $0x198] sm:$0xff]
        %v266 = vld [vmem:[%s210 + $0x1a0] sm:$0xf]
        %v267 = vld [vmem:[%s210 + $0x1a8] sm:$0xf]
        %v268 = vld [vmem:[%s210 + $0x1b0] sm:$0xf]
        %v269 = vld [vmem:[%s210 + $0x1b8] sm:$0xf]
        %vm270 = vcmask 883712
        %v272 = vsel %vm270, %v213, 0
        %vm274 = vcmask 1043456
        %v276 = vsel %vm274, %v266, 0
        %v279 = vsel %vm274, %v267, 0
        %v282 = vsel %vm274, %v268, 0
        %v285 = vsel %vm274, %v269, 0
        %287 = vmatprep.subr.mxu0 0.0
        %288 = vmatpush1.msra.mxu0 0.0
        %289 = vmatprep.subr.mxu0 0.0
        %290 = vmatpush1.msra.mxu0 0.0
        %291 = vmatprep.subr.mxu0 %v279
        %292 = vmatpush1.msra.mxu0 %v276
        %293 = vmatprep.subr.mxu0 %v263
        %294 = vmatpush1.msra.mxu0 %v262
        %295 = vmatprep.subr.mxu0 %v259
        %296 = vmatpush1.msra.mxu0 %v258
        %297 = vmatprep.subr.mxu0 %v255
        %298 = vmatpush1.msra.mxu0 %v254
        %299 = vmatprep.subr.mxu0 %v251
        %300 = vmatpush1.msra.mxu0 %v250
        %301 = vmatprep.subr.mxu0 %v247
        %302 = vmatpush1.msra.mxu0 %v246
        %303 = vmatprep.subr.mxu0 %v243
        %304 = vmatpush1.msra.mxu0 %v242
        %305 = vmatprep.subr.mxu0 %v239
        %306 = vmatpush1.msra.mxu0 %v238
        %307 = vmatprep.subr.mxu0 %v235
        %308 = vmatpush1.msra.mxu0 %v234
        %309 = vmatprep.subr.mxu0 %v231
        %310 = vmatpush1.msra.mxu0 %v230
        %311 = vmatprep.subr.mxu0 %v227
        %312 = vmatpush1.msra.mxu0 %v226
        %313 = vmatprep.subr.mxu0 %v223
        %314 = vmatpush1.msra.mxu0 %v222
        %315 = vmatprep.subr.mxu0 %v219
        %316 = vmatpush1.msra.mxu0 %v218
        %317 = vmatprep.subr.mxu0 %v215
        %318 = vmatpush1.msra.mxu0 %v214
        %319 = vmatprep.subr.mxu0 0.0
        %320 = vmatpush2.msra.mxu0 0.0
        %321 = vmatprep.subr.mxu0 0.0
        %322 = vmatpush2.msra.mxu0 0.0
        %323 = vmatprep.subr.mxu0 0.0
        %324 = vmatpush2.msra.mxu0 0.0
        %325 = vmatprep.subr.mxu0 0.0
        %326 = vmatpush2.msra.mxu0 0.0
        %327 = vmatprep.subr.mxu0 0.0
        %328 = vmatpush2.msra.mxu0 0.0
        %329 = vmatprep.subr.mxu0 0.0
        %330 = vmatpush2.msra.mxu0 0.0
        %331 = vmatprep.subr.mxu0 0.0
        %332 = vmatpush2.msra.mxu0 0.0
        %333 = vmatprep.subr.mxu0 0.0
        %334 = vmatpush2.msra.mxu0 0.0
        %335 = vmatprep.subr.mxu0 0.0
        %336 = vmatpush2.msra.mxu0 0.0
        %337 = vmatprep.subr.mxu0 0.0
        %338 = vmatpush2.msra.mxu0 0.0
        %339 = vmatprep.subr.mxu0 0.0
        %340 = vmatpush2.msra.mxu0 0.0
        %341 = vmatprep.subr.mxu0 0.0
        %342 = vmatpush2.msra.mxu0 0.0
        %343 = vmatprep.subr.mxu0 0.0
        %344 = vmatpush2.msra.mxu0 0.0
        %345 = vmatprep.subr.mxu0 0.0
        %346 = vmatpush2.msra.mxu0 0.0
        %347 = vmatprep.subr.mxu0 0.0
        %348 = vmatpush2.msra.mxu0 0.0
        %349 = vmatprep.subr.mxu0 0.0
        %350 = vmatpush2.msra.mxu0 0.0
        %351 = vmatprep.mubr.f32.mxu0 0.0
        %352 = vmatmul.mubr.f32.gmra.mxu0 %v272
        %v353 = vpop.f32.mrf.mxu0
        %v354 = vadd.f32 0.0, %v353
        %v355 = vpop.f32.mrf.mxu0
        %v356 = vadd.f32 0.0, %v355
        %357 = vdwg.mxu0
        %358 = vmatprep.subr.mxu0 0.0
        %359 = vmatpush1.msra.mxu0 0.0
        %360 = vmatprep.subr.mxu0 0.0
        %361 = vmatpush1.msra.mxu0 0.0
        %362 = vmatprep.subr.mxu0 %v285
        %363 = vmatpush1.msra.mxu0 %v282
        %364 = vmatprep.subr.mxu0 %v265
        %365 = vmatpush1.msra.mxu0 %v264
        %366 = vmatprep.subr.mxu0 %v261
        %367 = vmatpush1.msra.mxu0 %v260
        %368 = vmatprep.subr.mxu0 %v257
        %369 = vmatpush1.msra.mxu0 %v256
        %370 = vmatprep.subr.mxu0 %v253
        %371 = vmatpush1.msra.mxu0 %v252
        %372 = vmatprep.subr.mxu0 %v249
        %373 = vmatpush1.msra.mxu0 %v248
        %374 = vmatprep.subr.mxu0 %v245
        %375 = vmatpush1.msra.mxu0 %v244
        %376 = vmatprep.subr.mxu0 %v241
        %377 = vmatpush1.msra.mxu0 %v240
        %378 = vmatprep.subr.mxu0 %v237
        %379 = vmatpush1.msra.mxu0 %v236
        %380 = vmatprep.subr.mxu0 %v233
        %381 = vmatpush1.msra.mxu0 %v232
        %382 = vmatprep.subr.mxu0 %v229
        %383 = vmatpush1.msra.mxu0 %v228
        %384 = vmatprep.subr.mxu0 %v225
        %385 = vmatpush1.msra.mxu0 %v224
        %386 = vmatprep.subr.mxu0 %v221
        %387 = vmatpush1.msra.mxu0 %v220
        %388 = vmatprep.subr.mxu0 %v217
        %389 = vmatpush1.msra.mxu0 %v216
        %390 = vmatprep.subr.mxu0 0.0
        %391 = vmatpush2.msra.mxu0 0.0
        %392 = vmatprep.subr.mxu0 0.0
        %393 = vmatpush2.msra.mxu0 0.0
        %394 = vmatprep.subr.mxu0 0.0
        %395 = vmatpush2.msra.mxu0 0.0
        %396 = vmatprep.subr.mxu0 0.0
        %397 = vmatpush2.msra.mxu0 0.0
        %398 = vmatprep.subr.mxu0 0.0
        %399 = vmatpush2.msra.mxu0 0.0
        %400 = vmatprep.subr.mxu0 0.0
        %401 = vmatpush2.msra.mxu0 0.0
        %402 = vmatprep.subr.mxu0 0.0
        %403 = vmatpush2.msra.mxu0 0.0
        %404 = vmatprep.subr.mxu0 0.0
        %405 = vmatpush2.msra.mxu0 0.0
        %406 = vmatprep.subr.mxu0 0.0
        %407 = vmatpush2.msra.mxu0 0.0
        %408 = vmatprep.subr.mxu0 0.0
        %409 = vmatpush2.msra.mxu0 0.0
        %410 = vmatprep.subr.mxu0 0.0
        %411 = vmatpush2.msra.mxu0 0.0
        %412 = vmatprep.subr.mxu0 0.0
        %413 = vmatpush2.msra.mxu0 0.0
        %414 = vmatprep.subr.mxu0 0.0
        %415 = vmatpush2.msra.mxu0 0.0
        %416 = vmatprep.subr.mxu0 0.0
        %417 = vmatpush2.msra.mxu0 0.0
        %418 = vmatprep.subr.mxu0 0.0
        %419 = vmatpush2.msra.mxu0 0.0
        %420 = vmatprep.subr.mxu0 0.0
        %421 = vmatpush2.msra.mxu0 0.0
        %422 = vmatprep.mubr.f32.mxu0 0.0
        %423 = vmatmul.mubr.f32.gmra.mxu0 %v272
        %v424 = vpop.f32.mrf.mxu0
        %v425 = vadd.f32 0.0, %v424
        %v426 = vpop.f32.mrf.mxu0
        %v427 = vadd.f32 0.0, %v426
        %428 = vdwg.mxu0
        %429 = vst [vmem:[%s193] sm:$0xff] %v354
        %430 = vst [vmem:[%s193 + $0x8] sm:$0xff] %v356
        %431 = vst [vmem:[%s193 + $0x10] sm:$0xff] %v425
        %432 = vst [vmem:[%s193 + $0x18] sm:$0xff] %v427
        %s433 = sand.u32 %s103, 1
        %s434 = scalar_lea.sflag [#allocation3], %s433
        %s435 = sand.u32 %s103, 1
        %s436 = smul.addr %s435, 32
        %s437 = scalar_lea.vmem [#allocation2], %s436
        // Predicated region
        $region29: #{tpu_custom_call.1} parent=27 // pred_check
          %p438 = pneg %p113
        $region30: #{tpu_custom_call.1} parent=27 // pred_check_branch
          %440 = sbr.rel (%p438) target = $region32
        $region31: #{tpu_custom_call.1} parent=27 // pred_region
          %s441 = smul.u32 4, %s23
          %s443 = ssub.s32 512, 512
          %444 = vsyncadd %s434, %s443
          %s445 = smul.addr %s21, 4
          %s446 = sadd.s32 %s441, %s445
          %s447 = smul.addr %s22, 4
          %s448 = sadd.s32 %s446, %s447
          %s449 = smul.addr %s448, 128
          %s450 = scalar_lea.hbm %s2, %s449
          %s452 = sshll.u32 %s437, 4
          %s453 = int_to_ptr.vmem [resolvable:$true] %s452
          %455 = dma.vmem_to_hbm [thread:$0]  %s453, 512, %s450, %s434
        $region32: #{tpu_custom_call.1} parent=27 // pred_fallthru
          _
      $region28: #{tpu_custom_call.1} parent=5 // pred_fallthru
        _
      %p456 = scmp.le.s32.totalorder 2, %s11
      // Predicated region
      $region33: #{tpu_custom_call.1} parent=5 // pred_check
        %p457 = pneg %p456
      $region34: #{tpu_custom_call.1} parent=5 // pred_check_branch
        %459 = sbr.rel (%p457) target = $region36
      $region35: #{tpu_custom_call.1} parent=5 // pred_region
        %s460 = ssub.s32 %s11, 2
        // Predicated region
        $region37: #{tpu_custom_call.1} parent=35 // pred_check
          %p461 = pneg %p119
        $region38: #{tpu_custom_call.1} parent=35 // pred_check_branch
          %463 = sbr.rel (%p461) target = $region40
        $region39: #{tpu_custom_call.1} parent=35 // pred_region
          %s464 = sand.u32 %s104, 1
          %s465 = scalar_lea.sflag [#allocation3], %s464
          %s466 = sand.u32 %s104, 1
          %s467 = smul.addr %s466, 32
          %s468 = scalar_lea.vmem [#allocation2], %s467
          %469 = dma.done %s465, 512
        $region40: #{tpu_custom_call.1} parent=35 // pred_fallthru
          _
      $region36: #{tpu_custom_call.1} parent=5 // pred_fallthru
        _
    $region6: #{tpu_custom_call.1} parent=1 // loop_footer
      %s15 = sadd.s32 1, %s11
    $region7: #{tpu_custom_call.1} parent=1 // loop_footer_branch
      %10 = sbr.rel target = $region3
    $region8: #{tpu_custom_call.1} parent=1 // loop_exit
      _
    %470 = vsyncpa [#allocation3], 1
    %s471 = scalar_lea.sflag [#allocation3], 1
    %472 = vsyncpa %s471, 1

</llo_original>
